<compile_context>
chip_gen: v5e
topology: v5e:2x2
jax: 0.10.0
libtpu: 0.0.40
codegen_flags: <defaults>
</compile_context>

<pallas_src>
import functools

import jax
import jax.numpy as jnp
from jax.experimental import pallas as pl
from jax.experimental.pallas import tpu as pltpu


def _round_up(n, m):
    return ((n + m - 1) // m) * m


# ----------------------------------------------------------------------------
# Kernel
# ----------------------------------------------------------------------------
def _vae_kernel(
    x_ref, eps_ref,
    w1_ref, b1_ref,        # img_to_hidden        (Dp, Hp), (1, Hp)
    wms_ref, bms_ref,      # fused mean|std head  (Hp, 2*Lp), (1, 2*Lp)
    w4_ref, b4_ref,        # z_to_hidden          (Lp, Hp), (1, Hp)
    w5_ref, b5_ref,        # hidden_to_img        (Hp, Dp), (1, Dp)
    xrec_ref, ms_ref,
    *, lp: int,
):
    mm_dtype = w1_ref.dtype          # bf16 (default) or f32

    x = x_ref[...].astype(mm_dtype)

    # ---- encoder ----
    h = jnp.dot(x, w1_ref[...], preferred_element_type=jnp.float32) + b1_ref[...]
    h = jnp.maximum(h, 0.0)          # ReLU in f32 (VPU)

    # fused mean|std matmul: one lane-dense (Hp, 2*Lp) dot instead of two
    # under-filled (H, 20) dots with masked partial stores.
    ms = jnp.dot(h.astype(mm_dtype), wms_ref[...],
                 preferred_element_type=jnp.float32) + bms_ref[...]
    mean = ms[:, :lp]                # static, tile-aligned lane slices
    std = ms[:, lp:]

    # ---- reparameterize (epsilon ~ U[0,1), matching torch.rand_like) ----
    z = mean + std * eps_ref[...].astype(jnp.float32)

    # ---- decoder (note: no ReLU on the decoder hidden, matching the module) ----
    h2 = jnp.dot(z.astype(mm_dtype), w4_ref[...],
                 preferred_element_type=jnp.float32) + b4_ref[...]
    logits = jnp.dot(h2.astype(mm_dtype), w5_ref[...],
                     preferred_element_type=jnp.float32) + b5_ref[...]
    # sigmoid = exp (EUP) + approximate reciprocal (EUP); no f32 divide on VALU.
    xrec = pl.reciprocal(1.0 + jnp.exp(-logits), approx=True)

    xrec_ref[...] = xrec.astype(xrec_ref.dtype)
    ms_ref[...] = ms.astype(ms_ref.dtype)


# ----------------------------------------------------------------------------
# Wrapper
# ----------------------------------------------------------------------------
@functools.partial(jax.jit, static_argnames=("block_b", "use_bf16"))
def vae_forward(x, eps, params, *, block_b=None, use_bf16=True):
    """x: (B, input_dim) f32, eps: (B, latent_dim) f32, params: dict of weights."""
    B, D = x.shape
    L = eps.shape[1]
    H = params["w1"].shape[1]

    # --- batch tile selection -------------------------------------------------
    # Small batch: one grid step covering everything (grid overhead ~0.35us/step
    # would dominate otherwise).  Large batch: 256-row tiles -> MXU M well fed
    # and >=2 grid blocks so v7x's two TensorCores both get work.
    if block_b is None:
        block_b = B if B <= 512 else 256
    block_b = _round_up(min(block_b, max(B, 8)), 8)
    Bp = _round_up(B, block_b)

    # --- lane/tile-friendly feature padding ------------------------------------
    Dp = _round_up(D, 128)
    Hp = _round_up(H, 128)   # 200 -> 256: clean (8,128) tiles, full MXU N/K
    Lp = _round_up(L, 128)   # 20  -> 128: lane-dense mean|std output slab

    mm_dtype = jnp.bfloat16 if use_bf16 else jnp.float32

    def pad2(a, r, c, dtype):
        return jnp.zeros((r, c), dtype).at[: a.shape[0], : a.shape[1]].set(
            a.astype(dtype))

    w1 = pad2(params["w1"], Dp, Hp, mm_dtype)
    b1 = pad2(params["b1"], 1, Hp, jnp.float32)

    # fused mean|std weights: columns [0:L) = w2, [Lp:Lp+L) = w3 (zero padding
    # elsewhere -> padded latent lanes are exactly 0 and contribute nothing).
    wms = jnp.zeros((Hp, 2 * Lp), mm_dtype)
    wms = wms.at[:H, :L].set(params["w2"].astype(mm_dtype))
    wms = wms.at[:H, Lp:Lp + L].set(params["w3"].astype(mm_dtype))
    bms = jnp.zeros((1, 2 * Lp), jnp.float32)
    bms = bms.at[:, :L].set(params["b2"].astype(jnp.float32))
    bms = bms.at[:, Lp:Lp + L].set(params["b3"].astype(jnp.float32))

    w4 = pad2(params["w4"], Lp, Hp, mm_dtype)
    b4 = pad2(params["b4"], 1, Hp, jnp.float32)
    w5 = pad2(params["w5"], Hp, Dp, mm_dtype)
    b5 = pad2(params["b5"], 1, Dp, jnp.float32)

    xp = jnp.zeros((Bp, Dp), mm_dtype).at[:B, :D].set(x.astype(mm_dtype))
    epsp = jnp.zeros((Bp, Lp), jnp.float32).at[:B, :L].set(
        eps.astype(jnp.float32))

    grid = (Bp // block_b,)

    def rowmap(i):
        return (i, 0)

    def fullmap(i):
        return (0, 0)

    # VMEM footprint at these sizes is < 2 MiB even with block_b=512 and
    # double-buffered weights, so the default scoped VMEM limit is fine on
    # v5e/v6e (128 MiB) and v7x (64 MiB physical / 32 MiB scoped).  If block_b
    # is ever pushed into the multi-thousands, set
    # pltpu.CompilerParams(vmem_limit_bytes=...) and consider
    # pipeline_mode=pl.Buffered(1) on the (grid-invariant) weight specs.
    xrec_p, ms_p = pl.pallas_call(
        functools.partial(_vae_kernel, lp=Lp),
        out_shape=(
            jax.ShapeDtypeStruct((Bp, Dp), jnp.float32),       # x_reconstructed
            jax.ShapeDtypeStruct((Bp, 2 * Lp), jnp.float32),   # mean | std slab
        ),
        grid_spec=pltpu.PrefetchScalarGridSpec(
            num_scalar_prefetch=0,
            grid=grid,
            in_specs=[
                pl.BlockSpec((block_b, Dp), rowmap),      # x
                pl.BlockSpec((block_b, Lp), rowmap),      # eps
                pl.BlockSpec((Dp, Hp), fullmap),          # w1
                pl.BlockSpec((1, Hp), fullmap),           # b1
                pl.BlockSpec((Hp, 2 * Lp), fullmap),      # wms (w2|w3 fused)
                pl.BlockSpec((1, 2 * Lp), fullmap),       # bms
                pl.BlockSpec((Lp, Hp), fullmap),          # w4
                pl.BlockSpec((1, Hp), fullmap),           # b4
                pl.BlockSpec((Hp, Dp), fullmap),          # w5
                pl.BlockSpec((1, Dp), fullmap),           # b5
            ],
            out_specs=[
                pl.BlockSpec((block_b, Dp), rowmap),
                pl.BlockSpec((block_b, 2 * Lp), rowmap),
            ],
        ),
        compiler_params=pltpu.CompilerParams(
            dimension_semantics=("parallel",),
        ),
    )(xp, epsp, w1, b1, wms, bms, w4, b4, w5, b5)

    x_reconstructed = xrec_p[:B, :D]
    mean = ms_p[:B, :L]
    std = ms_p[:B, Lp:Lp + L]
    return x_reconstructed, mean, std


# ----------------------------------------------------------------------------
# Deterministic parameter init (PyTorch nn.Linear default: U(-1/sqrt(fan_in), +))
# ----------------------------------------------------------------------------
def init_params(key, input_dim, hidden_dim, latent_dim):
    def linear(k, fan_in, fan_out):
        kw, kb = jax.random.split(k)
        bound = 1.0 / jnp.sqrt(fan_in)
        w = jax.random.uniform(kw, (fan_in, fan_out), jnp.float32, -bound, bound)
        b = jax.random.uniform(kb, (1, fan_out), jnp.float32, -bound, bound)
        return w, b

    k1, k2, k3, k4, k5 = jax.random.split(key, 5)
    w1, b1 = linear(k1, input_dim, hidden_dim)    # img_to_hidden
    w2, b2 = linear(k2, hidden_dim, latent_dim)   # hidden_to_mean
    w3, b3 = linear(k3, hidden_dim, latent_dim)   # hidden_to_std
    w4, b4 = linear(k4, latent_dim, hidden_dim)   # z_to_hidden
    w5, b5 = linear(k5, hidden_dim, input_dim)    # hidden_to_img
    return dict(w1=w1, b1=b1, w2=w2, b2=b2, w3=w3, b3=b3,
                w4=w4, b4=b4, w5=w5, b5=b5)


# Pure-JAX reference mirroring the kernel's mixed precision (bf16 matmul inputs,
# f32 accumulation / elementwise math), for verification.
def vae_forward_ref(x, eps, p, *, use_bf16=True):
    mm_dtype = jnp.bfloat16 if use_bf16 else jnp.float32

    def mm(a, w):
        return jnp.dot(a.astype(mm_dtype), w.astype(mm_dtype),
                       preferred_element_type=jnp.float32)

    h = jnp.maximum(mm(x, p["w1"]) + p["b1"], 0.0)
    mean = mm(h, p["w2"]) + p["b2"]
    std = mm(h, p["w3"]) + p["b3"]
    z = mean + std * eps
    h2 = mm(z, p["w4"]) + p["b4"]
    logits = mm(h2, p["w5"]) + p["b5"]
    xrec = 1.0 / (1.0 + jnp.exp(-logits))
    return xrec, mean, std


if __name__ == "__main__":
    INPUT_DIM, HIDDEN_DIM, LATENT_DIM = 256, 200, 20
    BATCH = 16

    key = jax.random.PRNGKey(0)
    kx, keps, kparams = jax.random.split(key, 3)

    x = jax.random.uniform(kx, (BATCH, INPUT_DIM), jnp.float32)       # "image" input
    # TODO(synk): torch.rand_like's RNG stream is not reproducible in JAX; the
    # uniform epsilon is drawn here and fed to the kernel instead.
    eps = jax.random.uniform(keps, (BATCH, LATENT_DIM), jnp.float32)  # torch.rand_like
    params = init_params(kparams, INPUT_DIM, HIDDEN_DIM, LATENT_DIM)

    x_rec, mean, std = vae_forward(x, eps, params)
    jax.block_until_ready((x_rec, mean, std))

    # correctness check vs pure-JAX reference (same bf16/f32 mixed precision;
    # tolerance covers the approx-reciprocal sigmoid and padded-K accumulation).
    x_rec_r, mean_r, std_r = vae_forward_ref(x, eps, params, use_bf16=True)
    assert x_rec.shape == (BATCH, INPUT_DIM)
    assert mean.shape == (BATCH, LATENT_DIM)
    assert std.shape == (BATCH, LATENT_DIM)
    assert jnp.allclose(mean, mean_r, atol=5e-3, rtol=5e-3)
    assert jnp.allclose(std, std_r, atol=5e-3, rtol=5e-3)
    assert jnp.allclose(x_rec, x_rec_r, atol=5e-3, rtol=5e-3)

    print("KERNEL_OK")
</pallas_src>

<mosaic_0001>
module attributes {stable_mosaic.version = 11 : i64} {
  func.func @_vae_kernel(%arg0: i32, %arg1: memref<16x256xbf16, #tpu.memory_space<vmem>>, %arg2: memref<16x128xf32, #tpu.memory_space<vmem>>, %arg3: memref<256x256xbf16, #tpu.memory_space<vmem>>, %arg4: memref<1x256xf32, #tpu.memory_space<vmem>>, %arg5: memref<256x256xbf16, #tpu.memory_space<vmem>>, %arg6: memref<1x256xf32, #tpu.memory_space<vmem>>, %arg7: memref<128x256xbf16, #tpu.memory_space<vmem>>, %arg8: memref<1x256xf32, #tpu.memory_space<vmem>>, %arg9: memref<256x256xbf16, #tpu.memory_space<vmem>>, %arg10: memref<1x256xf32, #tpu.memory_space<vmem>>, %arg11: memref<16x256xf32, #tpu.memory_space<vmem>>, %arg12: memref<16x256xf32, #tpu.memory_space<vmem>>) attributes {dimension_semantics = [#tpu.dimension_semantics<parallel>], iteration_bounds = array<i64: 1>, scalar_prefetch = 0 : i64, scratch_operands = 0 : i64, tpu.core_type = #tpu.core_type<tc>, window_params = [{transform_indices = @transform_0, window_bounds = array<i64: 16, 256>}, {transform_indices = @transform_1, window_bounds = array<i64: 16, 128>}, {pipeline_mode = #tpu.pipeline_mode<synchronous>, transform_indices = @transform_2, window_bounds = array<i64: 256, 256>}, {pipeline_mode = #tpu.pipeline_mode<synchronous>, transform_indices = @transform_3, window_bounds = array<i64: 1, 256>}, {pipeline_mode = #tpu.pipeline_mode<synchronous>, transform_indices = @transform_4, window_bounds = array<i64: 256, 256>}, {pipeline_mode = #tpu.pipeline_mode<synchronous>, transform_indices = @transform_5, window_bounds = array<i64: 1, 256>}, {pipeline_mode = #tpu.pipeline_mode<synchronous>, transform_indices = @transform_6, window_bounds = array<i64: 128, 256>}, {pipeline_mode = #tpu.pipeline_mode<synchronous>, transform_indices = @transform_7, window_bounds = array<i64: 1, 256>}, {pipeline_mode = #tpu.pipeline_mode<synchronous>, transform_indices = @transform_8, window_bounds = array<i64: 256, 256>}, {pipeline_mode = #tpu.pipeline_mode<synchronous>, transform_indices = @transform_9, window_bounds = array<i64: 1, 256>}, {transform_indices = @transform_10, window_bounds = array<i64: 16, 256>}, {transform_indices = @transform_11, window_bounds = array<i64: 16, 256>}]} {
    %c0 = arith.constant 0 : index
    %c0_0 = arith.constant 0 : index
    %0 = vector.load %arg1[%c0, %c0_0] : memref<16x256xbf16, #tpu.memory_space<vmem>>, vector<16x256xbf16>
    %c0_1 = arith.constant 0 : index
    %c0_2 = arith.constant 0 : index
    %1 = vector.load %arg3[%c0_1, %c0_2] : memref<256x256xbf16, #tpu.memory_space<vmem>>, vector<256x256xbf16>
    %cst = arith.constant dense<0.000000e+00> : vector<16x256xf32>
    %2 = tpu.matmul %0, %1, %cst {dimension_numbers = #tpu.dot_dimension_numbers<[1], [0], [0], [1], [0, 0, 1, 1], [], []>} : vector<16x256xbf16>, vector<256x256xbf16>, vector<16x256xf32> -> vector<16x256xf32>
    %c0_3 = arith.constant 0 : index
    %c0_4 = arith.constant 0 : index
    %3 = vector.load %arg4[%c0_3, %c0_4] : memref<1x256xf32, #tpu.memory_space<vmem>>, vector<1x256xf32>
    %4 = vector.broadcast %3 : vector<1x256xf32> to vector<16x256xf32>
    %5 = arith.addf %2, %4 : vector<16x256xf32>
    %cst_5 = arith.constant 0.000000e+00 : f32
    %6 = vector.broadcast %cst_5 : f32 to vector<16x256xf32>
    %7 = arith.maximumf %5, %6 : vector<16x256xf32>
    %8 = arith.truncf %7 : vector<16x256xf32> to vector<16x256xbf16>
    %c0_6 = arith.constant 0 : index
    %c0_7 = arith.constant 0 : index
    %9 = vector.load %arg5[%c0_6, %c0_7] : memref<256x256xbf16, #tpu.memory_space<vmem>>, vector<256x256xbf16>
    %cst_8 = arith.constant dense<0.000000e+00> : vector<16x256xf32>
    %10 = tpu.matmul %8, %9, %cst_8 {dimension_numbers = #tpu.dot_dimension_numbers<[1], [0], [0], [1], [0, 0, 1, 1], [], []>} : vector<16x256xbf16>, vector<256x256xbf16>, vector<16x256xf32> -> vector<16x256xf32>
    %c0_9 = arith.constant 0 : index
    %c0_10 = arith.constant 0 : index
    %11 = vector.load %arg6[%c0_9, %c0_10] : memref<1x256xf32, #tpu.memory_space<vmem>>, vector<1x256xf32>
    %12 = vector.broadcast %11 : vector<1x256xf32> to vector<16x256xf32>
    %13 = arith.addf %10, %12 : vector<16x256xf32>
    %14 = vector.extract_strided_slice %13 {offsets = [0, 0], sizes = [16, 128], strides = [1, 1]} : vector<16x256xf32> to vector<16x128xf32>
    %15 = vector.extract_strided_slice %13 {offsets = [0, 128], sizes = [16, 128], strides = [1, 1]} : vector<16x256xf32> to vector<16x128xf32>
    %c0_11 = arith.constant 0 : index
    %c0_12 = arith.constant 0 : index
    %16 = vector.load %arg2[%c0_11, %c0_12] : memref<16x128xf32, #tpu.memory_space<vmem>>, vector<16x128xf32>
    %17 = arith.mulf %15, %16 : vector<16x128xf32>
    %18 = arith.addf %14, %17 : vector<16x128xf32>
    %19 = arith.truncf %18 : vector<16x128xf32> to vector<16x128xbf16>
    %c0_13 = arith.constant 0 : index
    %c0_14 = arith.constant 0 : index
    %20 = vector.load %arg7[%c0_13, %c0_14] : memref<128x256xbf16, #tpu.memory_space<vmem>>, vector<128x256xbf16>
    %cst_15 = arith.constant dense<0.000000e+00> : vector<16x256xf32>
    %21 = tpu.matmul %19, %20, %cst_15 {dimension_numbers = #tpu.dot_dimension_numbers<[1], [0], [0], [1], [0, 0, 1, 1], [], []>} : vector<16x128xbf16>, vector<128x256xbf16>, vector<16x256xf32> -> vector<16x256xf32>
    %c0_16 = arith.constant 0 : index
    %c0_17 = arith.constant 0 : index
    %22 = vector.load %arg8[%c0_16, %c0_17] : memref<1x256xf32, #tpu.memory_space<vmem>>, vector<1x256xf32>
    %23 = vector.broadcast %22 : vector<1x256xf32> to vector<16x256xf32>
    %24 = arith.addf %21, %23 : vector<16x256xf32>
    %25 = arith.truncf %24 : vector<16x256xf32> to vector<16x256xbf16>
    %c0_18 = arith.constant 0 : index
    %c0_19 = arith.constant 0 : index
    %26 = vector.load %arg9[%c0_18, %c0_19] : memref<256x256xbf16, #tpu.memory_space<vmem>>, vector<256x256xbf16>
    %cst_20 = arith.constant dense<0.000000e+00> : vector<16x256xf32>
    %27 = tpu.matmul %25, %26, %cst_20 {dimension_numbers = #tpu.dot_dimension_numbers<[1], [0], [0], [1], [0, 0, 1, 1], [], []>} : vector<16x256xbf16>, vector<256x256xbf16>, vector<16x256xf32> -> vector<16x256xf32>
    %c0_21 = arith.constant 0 : index
    %c0_22 = arith.constant 0 : index
    %28 = vector.load %arg10[%c0_21, %c0_22] : memref<1x256xf32, #tpu.memory_space<vmem>>, vector<1x256xf32>
    %29 = vector.broadcast %28 : vector<1x256xf32> to vector<16x256xf32>
    %30 = arith.addf %27, %29 : vector<16x256xf32>
    %cst_23 = arith.constant 0.000000e+00 : f32
    %31 = vector.broadcast %cst_23 : f32 to vector<16x256xf32>
    %32 = arith.subf %31, %30 : vector<16x256xf32>
    %33 = math.exp %32 : vector<16x256xf32>
    %cst_24 = arith.constant 1.000000e+00 : f32
    %34 = vector.broadcast %cst_24 : f32 to vector<16x256xf32>
    %35 = arith.addf %34, %33 : vector<16x256xf32>
    %36 = tpu.reciprocal %35 {approx = true} : vector<16x256xf32> -> vector<16x256xf32>
    %c0_25 = arith.constant 0 : index
    %c0_26 = arith.constant 0 : index
    %37 = vector.load %arg11[%c0_25, %c0_26] : memref<16x256xf32, #tpu.memory_space<vmem>>, vector<16x256xf32>
    tpu.vector_store %arg11[%c0_25, %c0_26], %36 {strides = array<i32>} : memref<16x256xf32, #tpu.memory_space<vmem>>, vector<16x256xf32>,
    %c0_27 = arith.constant 0 : index
    %c0_28 = arith.constant 0 : index
    %38 = vector.load %arg12[%c0_27, %c0_28] : memref<16x256xf32, #tpu.memory_space<vmem>>, vector<16x256xf32>
    tpu.vector_store %arg12[%c0_27, %c0_28], %13 {strides = array<i32>} : memref<16x256xf32, #tpu.memory_space<vmem>>, vector<16x256xf32>,
    return
  }
  func.func @transform_0(%arg0: i32) -> (i32, i32) {
    %c0_i32 = arith.constant 0 : i32
    %c0_i32_0 = arith.constant 0 : i32
    return %arg0, %c0_i32 : i32, i32
  }
  func.func @transform_1(%arg0: i32) -> (i32, i32) {
    %c0_i32 = arith.constant 0 : i32
    %c0_i32_0 = arith.constant 0 : i32
    return %arg0, %c0_i32 : i32, i32
  }
  func.func @transform_2(%arg0: i32) -> (i32, i32) {
    %c0_i32 = arith.constant 0 : i32
    %c0_i32_0 = arith.constant 0 : i32
    %c0_i32_1 = arith.constant 0 : i32
    return %c0_i32, %c0_i32_0 : i32, i32
  }
  func.func @transform_3(%arg0: i32) -> (i32, i32) {
    %c0_i32 = arith.constant 0 : i32
    %c0_i32_0 = arith.constant 0 : i32
    %c0_i32_1 = arith.constant 0 : i32
    return %c0_i32, %c0_i32_0 : i32, i32
  }
  func.func @transform_4(%arg0: i32) -> (i32, i32) {
    %c0_i32 = arith.constant 0 : i32
    %c0_i32_0 = arith.constant 0 : i32
    %c0_i32_1 = arith.constant 0 : i32
    return %c0_i32, %c0_i32_0 : i32, i32
  }
  func.func @transform_5(%arg0: i32) -> (i32, i32) {
    %c0_i32 = arith.constant 0 : i32
    %c0_i32_0 = arith.constant 0 : i32
    %c0_i32_1 = arith.constant 0 : i32
    return %c0_i32, %c0_i32_0 : i32, i32
  }
  func.func @transform_6(%arg0: i32) -> (i32, i32) {
    %c0_i32 = arith.constant 0 : i32
    %c0_i32_0 = arith.constant 0 : i32
    %c0_i32_1 = arith.constant 0 : i32
    return %c0_i32, %c0_i32_0 : i32, i32
  }
  func.func @transform_7(%arg0: i32) -> (i32, i32) {
    %c0_i32 = arith.constant 0 : i32
    %c0_i32_0 = arith.constant 0 : i32
    %c0_i32_1 = arith.constant 0 : i32
    return %c0_i32, %c0_i32_0 : i32, i32
  }
  func.func @transform_8(%arg0: i32) -> (i32, i32) {
    %c0_i32 = arith.constant 0 : i32
    %c0_i32_0 = arith.constant 0 : i32
    %c0_i32_1 = arith.constant 0 : i32
    return %c0_i32, %c0_i32_0 : i32, i32
  }
  func.func @transform_9(%arg0: i32) -> (i32, i32) {
    %c0_i32 = arith.constant 0 : i32
    %c0_i32_0 = arith.constant 0 : i32
    %c0_i32_1 = arith.constant 0 : i32
    return %c0_i32, %c0_i32_0 : i32, i32
  }
  func.func @transform_10(%arg0: i32) -> (i32, i32) {
    %c0_i32 = arith.constant 0 : i32
    %c0_i32_0 = arith.constant 0 : i32
    return %arg0, %c0_i32 : i32, i32
  }
  func.func @transform_11(%arg0: i32) -> (i32, i32) {
    %c0_i32 = arith.constant 0 : i32
    %c0_i32_0 = arith.constant 0 : i32
    return %arg0, %c0_i32 : i32, i32
  }
}

</mosaic_0001>

<llo_original>
// kernel: vae_forward.1
$region0: #{vae_forward.1}
  #allocation0 [shape = 'u32[]', space=smem, size = 0x4, offset = 0x4, fixed_abs, tag = 'smem constant byte address 0x4 - core index']
  #allocation1 [shape = 'u32[72,128]{1,0:T(1,128)}', space=vmem, size = 0x9000, scoped, tag = 'internal scratch']
  %s0 = inlined_call_operand.vmem [shape: bf16[16,256], index: 0, kind: input, shape index: {}]
  %s1 = inlined_call_operand.vmem [shape: f32[16,128], index: 1, kind: input, shape index: {}]
  %s2 = inlined_call_operand.vmem [shape: bf16[256,256], index: 2, kind: input, shape index: {}]
  %s3 = inlined_call_operand.vmem [shape: f32[1,256], index: 3, kind: input, shape index: {}]
  %s4 = inlined_call_operand.vmem [shape: bf16[256,256], index: 4, kind: input, shape index: {}]
  %s5 = inlined_call_operand.vmem [shape: f32[1,256], index: 5, kind: input, shape index: {}]
  %s6 = inlined_call_operand.vmem [shape: bf16[128,256], index: 6, kind: input, shape index: {}]
  %s7 = inlined_call_operand.vmem [shape: f32[1,256], index: 7, kind: input, shape index: {}]
  %s8 = inlined_call_operand.vmem [shape: bf16[256,256], index: 8, kind: input, shape index: {}]
  %s9 = inlined_call_operand.vmem [shape: f32[1,256], index: 9, kind: input, shape index: {}]
  %s10 = inlined_call_operand.hbm [shape: f32[16,256], index: 10, kind: output, shape index: {0}]
  %s11 = inlined_call_operand.vmem [shape: f32[16,256], index: 11, kind: output, shape index: {1}]
  %12 = xla_tuple %s10, %s11
  %s13 = sld [smem:[#allocation0]]
  $region58: #{vae_forward.1} parent=0
    _
  %s15 = ssub.s32 1, %s13
  %s16 = scalar_select 0, %s15, %s13
  $region1: #{vae_forward.1} parent=0
    #allocation2 [shape = 'u8[16384]{0}', space=vmem, size = 0x4000, scoped, tag = 'output window, operand 0, single buffered']
    #allocation3 [shape = 's32[1]{0}', space=sflag, size = 0x4, scoped, tag = 'scoped memory for vae_forward.1']
    %17 = vsyncpa [#allocation3], 0
    // Predicated region
    $region2: #{vae_forward.1} parent=1 // pred_check
      _
    $region3: #{vae_forward.1} parent=1 // pred_check_branch
      %19 = sbr.rel (0) target = $region5
    $region4: #{vae_forward.1} parent=1 // pred_region
      _
    $region5: #{vae_forward.1} parent=1 // pred_fallthru
      _
    // Predicated region
    $region6: #{vae_forward.1} parent=1 // pred_check
      _
    $region7: #{vae_forward.1} parent=1 // pred_check_branch
      %21 = sbr.rel (0) target = $region9
    $region8: #{vae_forward.1} parent=1 // pred_region
      _
    $region9: #{vae_forward.1} parent=1 // pred_fallthru
      _
    // Predicated region
    $region10: #{vae_forward.1} parent=1 // pred_check
      _
    $region11: #{vae_forward.1} parent=1 // pred_check_branch
      %23 = sbr.rel (0) target = $region13
    $region12: #{vae_forward.1} parent=1 // pred_region
      _
    $region13: #{vae_forward.1} parent=1 // pred_fallthru
      _
    // Predicated region
    $region14: #{vae_forward.1} parent=1 // pred_check
      _
    $region15: #{vae_forward.1} parent=1 // pred_check_branch
      %25 = sbr.rel (0) target = $region17
    $region16: #{vae_forward.1} parent=1 // pred_region
      _
    $region17: #{vae_forward.1} parent=1 // pred_fallthru
      _
    // Predicated region
    $region18: #{vae_forward.1} parent=1 // pred_check
      _
    $region19: #{vae_forward.1} parent=1 // pred_check_branch
      %27 = sbr.rel (0) target = $region21
    $region20: #{vae_forward.1} parent=1 // pred_region
      _
    $region21: #{vae_forward.1} parent=1 // pred_fallthru
      _
    // Predicated region
    $region22: #{vae_forward.1} parent=1 // pred_check
      _
    $region23: #{vae_forward.1} parent=1 // pred_check_branch
      %29 = sbr.rel (0) target = $region25
    $region24: #{vae_forward.1} parent=1 // pred_region
      _
    $region25: #{vae_forward.1} parent=1 // pred_fallthru
      _
    // Predicated region
    $region26: #{vae_forward.1} parent=1 // pred_check
      _
    $region27: #{vae_forward.1} parent=1 // pred_check_branch
      %31 = sbr.rel (0) target = $region29
    $region28: #{vae_forward.1} parent=1 // pred_region
      _
    $region29: #{vae_forward.1} parent=1 // pred_fallthru
      _
    // Predicated region
    $region30: #{vae_forward.1} parent=1 // pred_check
      _
    $region31: #{vae_forward.1} parent=1 // pred_check_branch
      %33 = sbr.rel (0) target = $region33
    $region32: #{vae_forward.1} parent=1 // pred_region
      _
    $region33: #{vae_forward.1} parent=1 // pred_fallthru
      _
    // Predicated region
    $region34: #{vae_forward.1} parent=1 // pred_check
      _
    $region35: #{vae_forward.1} parent=1 // pred_check_branch
      %35 = sbr.rel (0) target = $region37
    $region36: #{vae_forward.1} parent=1 // pred_region
      _
    $region37: #{vae_forward.1} parent=1 // pred_fallthru
      _
    // Predicated region
    $region38: #{vae_forward.1} parent=1 // pred_check
      _
    $region39: #{vae_forward.1} parent=1 // pred_check_branch
      %37 = sbr.rel (0) target = $region41
    $region40: #{vae_forward.1} parent=1 // pred_region
      _
    $region41: #{vae_forward.1} parent=1 // pred_fallthru
      _
    %v38 = vld [vmem:[%s0] sm:$0xff]
    %v39 = vld [vmem:[%s0 + $0x8] sm:$0xff]
    %v40 = vld [vmem:[%s2] sm:$0xff]
    %v41 = vld [vmem:[%s2 + $0x8] sm:$0xff]
    %v42 = vld [vmem:[%s2 + $0x10] sm:$0xff]
    %v43 = vld [vmem:[%s2 + $0x18] sm:$0xff]
    %v44 = vld [vmem:[%s2 + $0x20] sm:$0xff]
    %v45 = vld [vmem:[%s2 + $0x28] sm:$0xff]
    %v46 = vld [vmem:[%s2 + $0x30] sm:$0xff]
    %v47 = vld [vmem:[%s2 + $0x38] sm:$0xff]
    %v48 = vld [vmem:[%s2 + $0x40] sm:$0xff]
    %v49 = vld [vmem:[%s2 + $0x48] sm:$0xff]
    %v50 = vld [vmem:[%s2 + $0x50] sm:$0xff]
    %v51 = vld [vmem:[%s2 + $0x58] sm:$0xff]
    %v52 = vld [vmem:[%s2 + $0x60] sm:$0xff]
    %v53 = vld [vmem:[%s2 + $0x68] sm:$0xff]
    %v54 = vld [vmem:[%s2 + $0x70] sm:$0xff]
    %v55 = vld [vmem:[%s2 + $0x78] sm:$0xff]
    %v56 = vld [vmem:[%s2 + $0x80] sm:$0xff]
    %v57 = vld [vmem:[%s2 + $0x88] sm:$0xff]
    %v58 = vld [vmem:[%s2 + $0x90] sm:$0xff]
    %v59 = vld [vmem:[%s2 + $0x98] sm:$0xff]
    %v60 = vld [vmem:[%s2 + $0xa0] sm:$0xff]
    %v61 = vld [vmem:[%s2 + $0xa8] sm:$0xff]
    %v62 = vld [vmem:[%s2 + $0xb0] sm:$0xff]
    %v63 = vld [vmem:[%s2 + $0xb8] sm:$0xff]
    %v64 = vld [vmem:[%s2 + $0xc0] sm:$0xff]
    %v65 = vld [vmem:[%s2 + $0xc8] sm:$0xff]
    %v66 = vld [vmem:[%s2 + $0xd0] sm:$0xff]
    %v67 = vld [vmem:[%s2 + $0xd8] sm:$0xff]
    %v68 = vld [vmem:[%s2 + $0xe0] sm:$0xff]
    %v69 = vld [vmem:[%s2 + $0xe8] sm:$0xff]
    %v70 = vld [vmem:[%s2 + $0xf0] sm:$0xff]
    %v71 = vld [vmem:[%s2 + $0xf8] sm:$0xff]
    %v72 = vld [vmem:[%s3] sm:$0x3]
    %v74 = vperm.slane %v72, 0
    %v75 = vperm.slane %v72, 1
    %v80 = vunpack.c.l.b16 %v38
    %v81 = vunpack.c.h.b16 %v38
    %v82 = vunpack.c.l.b16 %v39
    %v83 = vunpack.c.h.b16 %v39
    %v84 = vpack.c.b16 %v82, %v80
    %v85 = vpack.c.b16 %v83, %v81
    %v120 = vunpack.c.l.b16 %v40
    %v121 = vunpack.c.h.b16 %v40
    %v122 = vunpack.c.l.b16 %v41
    %v123 = vunpack.c.h.b16 %v41
    %v124 = vunpack.c.l.b16 %v42
    %v125 = vunpack.c.h.b16 %v42
    %v126 = vunpack.c.l.b16 %v43
    %v127 = vunpack.c.h.b16 %v43
    %v128 = vunpack.c.l.b16 %v44
    %v129 = vunpack.c.h.b16 %v44
    %v130 = vunpack.c.l.b16 %v45
    %v131 = vunpack.c.h.b16 %v45
    %v132 = vunpack.c.l.b16 %v46
    %v133 = vunpack.c.h.b16 %v46
    %v134 = vunpack.c.l.b16 %v47
    %v135 = vunpack.c.h.b16 %v47
    %v136 = vunpack.c.l.b16 %v48
    %v137 = vunpack.c.h.b16 %v48
    %v138 = vunpack.c.l.b16 %v49
    %v139 = vunpack.c.h.b16 %v49
    %v140 = vunpack.c.l.b16 %v50
    %v141 = vunpack.c.h.b16 %v50
    %v142 = vunpack.c.l.b16 %v51
    %v143 = vunpack.c.h.b16 %v51
    %v144 = vunpack.c.l.b16 %v52
    %v145 = vunpack.c.h.b16 %v52
    %v146 = vunpack.c.l.b16 %v53
    %v147 = vunpack.c.h.b16 %v53
    %v148 = vunpack.c.l.b16 %v54
    %v149 = vunpack.c.h.b16 %v54
    %v150 = vunpack.c.l.b16 %v55
    %v151 = vunpack.c.h.b16 %v55
    %v152 = vunpack.c.l.b16 %v56
    %v153 = vunpack.c.h.b16 %v56
    %v154 = vunpack.c.l.b16 %v57
    %v155 = vunpack.c.h.b16 %v57
    %v156 = vunpack.c.l.b16 %v58
    %v157 = vunpack.c.h.b16 %v58
    %v158 = vunpack.c.l.b16 %v59
    %v159 = vunpack.c.h.b16 %v59
    %v160 = vunpack.c.l.b16 %v60
    %v161 = vunpack.c.h.b16 %v60
    %v162 = vunpack.c.l.b16 %v61
    %v163 = vunpack.c.h.b16 %v61
    %v164 = vunpack.c.l.b16 %v62
    %v165 = vunpack.c.h.b16 %v62
    %v166 = vunpack.c.l.b16 %v63
    %v167 = vunpack.c.h.b16 %v63
    %v168 = vunpack.c.l.b16 %v64
    %v169 = vunpack.c.h.b16 %v64
    %v170 = vunpack.c.l.b16 %v65
    %v171 = vunpack.c.h.b16 %v65
    %v172 = vunpack.c.l.b16 %v66
    %v173 = vunpack.c.h.b16 %v66
    %v174 = vunpack.c.l.b16 %v67
    %v175 = vunpack.c.h.b16 %v67
    %v176 = vunpack.c.l.b16 %v68
    %v177 = vunpack.c.h.b16 %v68
    %v178 = vunpack.c.l.b16 %v69
    %v179 = vunpack.c.h.b16 %v69
    %v180 = vunpack.c.l.b16 %v70
    %v181 = vunpack.c.h.b16 %v70
    %v182 = vunpack.c.l.b16 %v71
    %v183 = vunpack.c.h.b16 %v71
    %v184 = vpack.c.b16 %v122, %v120
    %v185 = vpack.c.b16 %v123, %v121
    %v186 = vpack.c.b16 %v126, %v124
    %v187 = vpack.c.b16 %v127, %v125
    %v188 = vpack.c.b16 %v130, %v128
    %v189 = vpack.c.b16 %v131, %v129
    %v190 = vpack.c.b16 %v134, %v132
    %v191 = vpack.c.b16 %v135, %v133
    %v192 = vpack.c.b16 %v138, %v136
    %v193 = vpack.c.b16 %v139, %v137
    %v194 = vpack.c.b16 %v142, %v140
    %v195 = vpack.c.b16 %v143, %v141
    %v196 = vpack.c.b16 %v146, %v144
    %v197 = vpack.c.b16 %v147, %v145
    %v198 = vpack.c.b16 %v150, %v148
    %v199 = vpack.c.b16 %v151, %v149
    %v200 = vpack.c.b16 %v154, %v152
    %v201 = vpack.c.b16 %v155, %v153
    %v202 = vpack.c.b16 %v158, %v156
    %v203 = vpack.c.b16 %v159, %v157
    %v204 = vpack.c.b16 %v162, %v160
    %v205 = vpack.c.b16 %v163, %v161
    %v206 = vpack.c.b16 %v166, %v164
    %v207 = vpack.c.b16 %v167, %v165
    %v208 = vpack.c.b16 %v170, %v168
    %v209 = vpack.c.b16 %v171, %v169
    %v210 = vpack.c.b16 %v174, %v172
    %v211 = vpack.c.b16 %v175, %v173
    %v212 = vpack.c.b16 %v178, %v176
    %v213 = vpack.c.b16 %v179, %v177
    %v214 = vpack.c.b16 %v182, %v180
    %v215 = vpack.c.b16 %v183, %v181
    %248 = vmatpush.bf16.msra.mxu0 %v198
    %249 = vmatpush.bf16.msra.mxu0 %v196
    %250 = vmatpush.bf16.msra.mxu0 %v194
    %251 = vmatpush.bf16.msra.mxu0 %v192
    %252 = vmatpush.bf16.msra.mxu0 %v190
    %253 = vmatpush.bf16.msra.mxu0 %v188
    %254 = vmatpush.bf16.msra.mxu0 %v186
    %255 = vmatpush.bf16.msra.mxu0 %v184
    %256 = vmatmul.bf16.gmra.mxu0 %v84
    %v257 = vpop.f32.mrf.mxu0
    %v258 = vadd.f32 %v74, %v257
    %v259 = vpop.f32.mrf.mxu0
    %v260 = vadd.f32 %v74, %v259
    %261 = vdwg.mxu0
    %262 = vmatpush.bf16.msra.mxu0 %v214
    %263 = vmatpush.bf16.msra.mxu0 %v212
    %264 = vmatpush.bf16.msra.mxu0 %v210
    %265 = vmatpush.bf16.msra.mxu0 %v208
    %266 = vmatpush.bf16.msra.mxu0 %v206
    %267 = vmatpush.bf16.msra.mxu0 %v204
    %268 = vmatpush.bf16.msra.mxu0 %v202
    %269 = vmatpush.bf16.msra.mxu0 %v200
    %270 = vmatmul.bf16.gmra.mxu0 %v85
    %v271 = vpop.f32.mrf.mxu0
    %v272 = vadd.f32 %v258, %v271
    %v273 = vpop.f32.mrf.mxu0
    %v274 = vadd.f32 %v260, %v273
    %275 = vdwg.mxu0
    %276 = vmatpush.bf16.msra.mxu0 %v199
    %277 = vmatpush.bf16.msra.mxu0 %v197
    %278 = vmatpush.bf16.msra.mxu0 %v195
    %279 = vmatpush.bf16.msra.mxu0 %v193
    %280 = vmatpush.bf16.msra.mxu0 %v191
    %281 = vmatpush.bf16.msra.mxu0 %v189
    %282 = vmatpush.bf16.msra.mxu0 %v187
    %283 = vmatpush.bf16.msra.mxu0 %v185
    %284 = vmatmul.bf16.gmra.mxu0 %v84
    %v285 = vpop.f32.mrf.mxu0
    %v286 = vadd.f32 %v75, %v285
    %v287 = vpop.f32.mrf.mxu0
    %v288 = vadd.f32 %v75, %v287
    %289 = vdwg.mxu0
    %290 = vmatpush.bf16.msra.mxu0 %v215
    %291 = vmatpush.bf16.msra.mxu0 %v213
    %292 = vmatpush.bf16.msra.mxu0 %v211
    %293 = vmatpush.bf16.msra.mxu0 %v209
    %294 = vmatpush.bf16.msra.mxu0 %v207
    %295 = vmatpush.bf16.msra.mxu0 %v205
    %296 = vmatpush.bf16.msra.mxu0 %v203
    %297 = vmatpush.bf16.msra.mxu0 %v201
    %298 = vmatmul.bf16.gmra.mxu0 %v85
    %v299 = vpop.f32.mrf.mxu0
    %v300 = vadd.f32 %v286, %v299
    %v301 = vpop.f32.mrf.mxu0
    %v302 = vadd.f32 %v288, %v301
    %303 = vdwg.mxu0
    %v304 = vmax.f32 %v272, 0.0
    %v305 = vmax.f32 %v300, 0.0
    %v306 = vmax.f32 %v274, 0.0
    %v307 = vmax.f32 %v302, 0.0
    %v308 = vpack.c.bf16 %v306, %v304
    %v309 = vpack.c.bf16 %v307, %v305
    %v310 = vld [vmem:[%s4] sm:$0xff]
    %v311 = vld [vmem:[%s4 + $0x8] sm:$0xff]
    %v312 = vld [vmem:[%s4 + $0x10] sm:$0xff]
    %v313 = vld [vmem:[%s4 + $0x18] sm:$0xff]
    %v314 = vld [vmem:[%s4 + $0x20] sm:$0xff]
    %v315 = vld [vmem:[%s4 + $0x28] sm:$0xff]
    %v316 = vld [vmem:[%s4 + $0x30] sm:$0xff]
    %v317 = vld [vmem:[%s4 + $0x38] sm:$0xff]
    %v318 = vld [vmem:[%s4 + $0x40] sm:$0xff]
    %v319 = vld [vmem:[%s4 + $0x48] sm:$0xff]
    %v320 = vld [vmem:[%s4 + $0x50] sm:$0xff]
    %v321 = vld [vmem:[%s4 + $0x58] sm:$0xff]
    %v322 = vld [vmem:[%s4 + $0x60] sm:$0xff]
    %v323 = vld [vmem:[%s4 + $0x68] sm:$0xff]
    %v324 = vld [vmem:[%s4 + $0x70] sm:$0xff]
    %v325 = vld [vmem:[%s4 + $0x78] sm:$0xff]
    %v326 = vld [vmem:[%s4 + $0x80] sm:$0xff]
    %v327 = vld [vmem:[%s4 + $0x88] sm:$0xff]
    %v328 = vld [vmem:[%s4 + $0x90] sm:$0xff]
    %v329 = vld [vmem:[%s4 + $0x98] sm:$0xff]
    %v330 = vld [vmem:[%s4 + $0xa0] sm:$0xff]
    %v331 = vld [vmem:[%s4 + $0xa8] sm:$0xff]
    %v332 = vld [vmem:[%s4 + $0xb0] sm:$0xff]
    %v333 = vld [vmem:[%s4 + $0xb8] sm:$0xff]
    %v334 = vld [vmem:[%s4 + $0xc0] sm:$0xff]
    %v335 = vld [vmem:[%s4 + $0xc8] sm:$0xff]
    %v336 = vld [vmem:[%s4 + $0xd0] sm:$0xff]
    %v337 = vld [vmem:[%s4 + $0xd8] sm:$0xff]
    %v338 = vld [vmem:[%s4 + $0xe0] sm:$0xff]
    %v339 = vld [vmem:[%s4 + $0xe8] sm:$0xff]
    %v340 = vld [vmem:[%s4 + $0xf0] sm:$0xff]
    %v341 = vld [vmem:[%s4 + $0xf8] sm:$0xff]
    %v342 = vld [vmem:[%s5] sm:$0x3]
    %v344 = vperm.slane %v342, 0
    %v345 = vperm.slane %v342, 1
    %v380 = vunpack.c.l.b16 %v310
    %v381 = vunpack.c.h.b16 %v310
    %v382 = vunpack.c.l.b16 %v311
    %v383 = vunpack.c.h.b16 %v311
    %v384 = vunpack.c.l.b16 %v312
    %v385 = vunpack.c.h.b16 %v312
    %v386 = vunpack.c.l.b16 %v313
    %v387 = vunpack.c.h.b16 %v313
    %v388 = vunpack.c.l.b16 %v314
    %v389 = vunpack.c.h.b16 %v314
    %v390 = vunpack.c.l.b16 %v315
    %v391 = vunpack.c.h.b16 %v315
    %v392 = vunpack.c.l.b16 %v316
    %v393 = vunpack.c.h.b16 %v316
    %v394 = vunpack.c.l.b16 %v317
    %v395 = vunpack.c.h.b16 %v317
    %v396 = vunpack.c.l.b16 %v318
    %v397 = vunpack.c.h.b16 %v318
    %v398 = vunpack.c.l.b16 %v319
    %v399 = vunpack.c.h.b16 %v319
    %v400 = vunpack.c.l.b16 %v320
    %v401 = vunpack.c.h.b16 %v320
    %v402 = vunpack.c.l.b16 %v321
    %v403 = vunpack.c.h.b16 %v321
    %v404 = vunpack.c.l.b16 %v322
    %v405 = vunpack.c.h.b16 %v322
    %v406 = vunpack.c.l.b16 %v323
    %v407 = vunpack.c.h.b16 %v323
    %v408 = vunpack.c.l.b16 %v324
    %v409 = vunpack.c.h.b16 %v324
    %v410 = vunpack.c.l.b16 %v325
    %v411 = vunpack.c.h.b16 %v325
    %v412 = vunpack.c.l.b16 %v326
    %v413 = vunpack.c.h.b16 %v326
    %v414 = vunpack.c.l.b16 %v327
    %v415 = vunpack.c.h.b16 %v327
    %v416 = vunpack.c.l.b16 %v328
    %v417 = vunpack.c.h.b16 %v328
    %v418 = vunpack.c.l.b16 %v329
    %v419 = vunpack.c.h.b16 %v329
    %v420 = vunpack.c.l.b16 %v330
    %v421 = vunpack.c.h.b16 %v330
    %v422 = vunpack.c.l.b16 %v331
    %v423 = vunpack.c.h.b16 %v331
    %v424 = vunpack.c.l.b16 %v332
    %v425 = vunpack.c.h.b16 %v332
    %v426 = vunpack.c.l.b16 %v333
    %v427 = vunpack.c.h.b16 %v333
    %v428 = vunpack.c.l.b16 %v334
    %v429 = vunpack.c.h.b16 %v334
    %v430 = vunpack.c.l.b16 %v335
    %v431 = vunpack.c.h.b16 %v335
    %v432 = vunpack.c.l.b16 %v336
    %v433 = vunpack.c.h.b16 %v336
    %v434 = vunpack.c.l.b16 %v337
    %v435 = vunpack.c.h.b16 %v337
    %v436 = vunpack.c.l.b16 %v338
    %v437 = vunpack.c.h.b16 %v338
    %v438 = vunpack.c.l.b16 %v339
    %v439 = vunpack.c.h.b16 %v339
    %v440 = vunpack.c.l.b16 %v340
    %v441 = vunpack.c.h.b16 %v340
    %v442 = vunpack.c.l.b16 %v341
    %v443 = vunpack.c.h.b16 %v341
    %v444 = vpack.c.b16 %v382, %v380
    %v445 = vpack.c.b16 %v383, %v381
    %v446 = vpack.c.b16 %v386, %v384
    %v447 = vpack.c.b16 %v387, %v385
    %v448 = vpack.c.b16 %v390, %v388
    %v449 = vpack.c.b16 %v391, %v389
    %v450 = vpack.c.b16 %v394, %v392
    %v451 = vpack.c.b16 %v395, %v393
    %v452 = vpack.c.b16 %v398, %v396
    %v453 = vpack.c.b16 %v399, %v397
    %v454 = vpack.c.b16 %v402, %v400
    %v455 = vpack.c.b16 %v403, %v401
    %v456 = vpack.c.b16 %v406, %v404
    %v457 = vpack.c.b16 %v407, %v405
    %v458 = vpack.c.b16 %v410, %v408
    %v459 = vpack.c.b16 %v411, %v409
    %v460 = vpack.c.b16 %v414, %v412
    %v461 = vpack.c.b16 %v415, %v413
    %v462 = vpack.c.b16 %v418, %v416
    %v463 = vpack.c.b16 %v419, %v417
    %v464 = vpack.c.b16 %v422, %v420
    %v465 = vpack.c.b16 %v423, %v421
    %v466 = vpack.c.b16 %v426, %v424
    %v467 = vpack.c.b16 %v427, %v425
    %v468 = vpack.c.b16 %v430, %v428
    %v469 = vpack.c.b16 %v431, %v429
    %v470 = vpack.c.b16 %v434, %v432
    %v471 = vpack.c.b16 %v435, %v433
    %v472 = vpack.c.b16 %v438, %v436
    %v473 = vpack.c.b16 %v439, %v437
    %v474 = vpack.c.b16 %v442, %v440
    %v475 = vpack.c.b16 %v443, %v441
    %508 = vmatpush.bf16.msra.mxu0 %v458
    %509 = vmatpush.bf16.msra.mxu0 %v456
    %510 = vmatpush.bf16.msra.mxu0 %v454
    %511 = vmatpush.bf16.msra.mxu0 %v452
    %512 = vmatpush.bf16.msra.mxu0 %v450
    %513 = vmatpush.bf16.msra.mxu0 %v448
    %514 = vmatpush.bf16.msra.mxu0 %v446
    %515 = vmatpush.bf16.msra.mxu0 %v444
    %516 = vmatmul.bf16.gmra.mxu0 %v308
    %v517 = vpop.f32.mrf.mxu0
    %v518 = vadd.f32 %v344, %v517
    %v519 = vpop.f32.mrf.mxu0
    %v520 = vadd.f32 %v344, %v519
    %521 = vdwg.mxu0
    %522 = vmatpush.bf16.msra.mxu0 %v474
    %523 = vmatpush.bf16.msra.mxu0 %v472
    %524 = vmatpush.bf16.msra.mxu0 %v470
    %525 = vmatpush.bf16.msra.mxu0 %v468
    %526 = vmatpush.bf16.msra.mxu0 %v466
    %527 = vmatpush.bf16.msra.mxu0 %v464
    %528 = vmatpush.bf16.msra.mxu0 %v462
    %529 = vmatpush.bf16.msra.mxu0 %v460
    %530 = vmatmul.bf16.gmra.mxu0 %v309
    %v531 = vpop.f32.mrf.mxu0
    %v532 = vadd.f32 %v518, %v531
    %v533 = vpop.f32.mrf.mxu0
    %v534 = vadd.f32 %v520, %v533
    %535 = vdwg.mxu0
    %536 = vmatpush.bf16.msra.mxu0 %v459
    %537 = vmatpush.bf16.msra.mxu0 %v457
    %538 = vmatpush.bf16.msra.mxu0 %v455
    %539 = vmatpush.bf16.msra.mxu0 %v453
    %540 = vmatpush.bf16.msra.mxu0 %v451
    %541 = vmatpush.bf16.msra.mxu0 %v449
    %542 = vmatpush.bf16.msra.mxu0 %v447
    %543 = vmatpush.bf16.msra.mxu0 %v445
    %544 = vmatmul.bf16.gmra.mxu0 %v308
    %v545 = vpop.f32.mrf.mxu0
    %v546 = vadd.f32 %v345, %v545
    %v547 = vpop.f32.mrf.mxu0
    %v548 = vadd.f32 %v345, %v547
    %549 = vdwg.mxu0
    %550 = vmatpush.bf16.msra.mxu0 %v475
    %551 = vmatpush.bf16.msra.mxu0 %v473
    %552 = vmatpush.bf16.msra.mxu0 %v471
    %553 = vmatpush.bf16.msra.mxu0 %v469
    %554 = vmatpush.bf16.msra.mxu0 %v467
    %555 = vmatpush.bf16.msra.mxu0 %v465
    %556 = vmatpush.bf16.msra.mxu0 %v463
    %557 = vmatpush.bf16.msra.mxu0 %v461
    %558 = vmatmul.bf16.gmra.mxu0 %v309
    %v559 = vpop.f32.mrf.mxu0
    %v560 = vadd.f32 %v546, %v559
    %v561 = vpop.f32.mrf.mxu0
    %v562 = vadd.f32 %v548, %v561
    %563 = vdwg.mxu0
    %v564 = vld [vmem:[%s1] sm:$0xff]
    %v565 = vld [vmem:[%s1 + $0x8] sm:$0xff]
    %v566 = vmul.f32 %v560, %v564
    %v567 = vmul.f32 %v562, %v565
    %v568 = vadd.f32 %v532, %v566
    %v569 = vadd.f32 %v534, %v567
    %v570 = vpack.c.bf16 %v569, %v568
    %v571 = vld [vmem:[%s6] sm:$0xff]
    %v572 = vld [vmem:[%s6 + $0x8] sm:$0xff]
    %v573 = vld [vmem:[%s6 + $0x10] sm:$0xff]
    %v574 = vld [vmem:[%s6 + $0x18] sm:$0xff]
    %v575 = vld [vmem:[%s6 + $0x20] sm:$0xff]
    %v576 = vld [vmem:[%s6 + $0x28] sm:$0xff]
    %v577 = vld [vmem:[%s6 + $0x30] sm:$0xff]
    %v578 = vld [vmem:[%s6 + $0x38] sm:$0xff]
    %v579 = vld [vmem:[%s6 + $0x40] sm:$0xff]
    %v580 = vld [vmem:[%s6 + $0x48] sm:$0xff]
    %v581 = vld [vmem:[%s6 + $0x50] sm:$0xff]
    %v582 = vld [vmem:[%s6 + $0x58] sm:$0xff]
    %v583 = vld [vmem:[%s6 + $0x60] sm:$0xff]
    %v584 = vld [vmem:[%s6 + $0x68] sm:$0xff]
    %v585 = vld [vmem:[%s6 + $0x70] sm:$0xff]
    %v586 = vld [vmem:[%s6 + $0x78] sm:$0xff]
    %v587 = vld [vmem:[%s7] sm:$0x3]
    %v589 = vperm.slane %v587, 0
    %v590 = vperm.slane %v587, 1
    %v609 = vunpack.c.l.b16 %v571
    %v610 = vunpack.c.h.b16 %v571
    %v611 = vunpack.c.l.b16 %v572
    %v612 = vunpack.c.h.b16 %v572
    %v613 = vunpack.c.l.b16 %v573
    %v614 = vunpack.c.h.b16 %v573
    %v615 = vunpack.c.l.b16 %v574
    %v616 = vunpack.c.h.b16 %v574
    %v617 = vunpack.c.l.b16 %v575
    %v618 = vunpack.c.h.b16 %v575
    %v619 = vunpack.c.l.b16 %v576
    %v620 = vunpack.c.h.b16 %v576
    %v621 = vunpack.c.l.b16 %v577
    %v622 = vunpack.c.h.b16 %v577
    %v623 = vunpack.c.l.b16 %v578
    %v624 = vunpack.c.h.b16 %v578
    %v625 = vunpack.c.l.b16 %v579
    %v626 = vunpack.c.h.b16 %v579
    %v627 = vunpack.c.l.b16 %v580
    %v628 = vunpack.c.h.b16 %v580
    %v629 = vunpack.c.l.b16 %v581
    %v630 = vunpack.c.h.b16 %v581
    %v631 = vunpack.c.l.b16 %v582
    %v632 = vunpack.c.h.b16 %v582
    %v633 = vunpack.c.l.b16 %v583
    %v634 = vunpack.c.h.b16 %v583
    %v635 = vunpack.c.l.b16 %v584
    %v636 = vunpack.c.h.b16 %v584
    %v637 = vunpack.c.l.b16 %v585
    %v638 = vunpack.c.h.b16 %v585
    %v639 = vunpack.c.l.b16 %v586
    %v640 = vunpack.c.h.b16 %v586
    %v641 = vpack.c.b16 %v611, %v609
    %v642 = vpack.c.b16 %v612, %v610
    %v643 = vpack.c.b16 %v615, %v613
    %v644 = vpack.c.b16 %v616, %v614
    %v645 = vpack.c.b16 %v619, %v617
    %v646 = vpack.c.b16 %v620, %v618
    %v647 = vpack.c.b16 %v623, %v621
    %v648 = vpack.c.b16 %v624, %v622
    %v649 = vpack.c.b16 %v627, %v625
    %v650 = vpack.c.b16 %v628, %v626
    %v651 = vpack.c.b16 %v631, %v629
    %v652 = vpack.c.b16 %v632, %v630
    %v653 = vpack.c.b16 %v635, %v633
    %v654 = vpack.c.b16 %v636, %v634
    %v655 = vpack.c.b16 %v639, %v637
    %v656 = vpack.c.b16 %v640, %v638
    %673 = vmatpush.bf16.msra.mxu0 %v655
    %674 = vmatpush.bf16.msra.mxu0 %v653
    %675 = vmatpush.bf16.msra.mxu0 %v651
    %676 = vmatpush.bf16.msra.mxu0 %v649
    %677 = vmatpush.bf16.msra.mxu0 %v647
    %678 = vmatpush.bf16.msra.mxu0 %v645
    %679 = vmatpush.bf16.msra.mxu0 %v643
    %680 = vmatpush.bf16.msra.mxu0 %v641
    %681 = vmatmul.bf16.gmra.mxu0 %v570
    %v682 = vpop.f32.mrf.mxu0
    %v683 = vadd.f32 %v589, %v682
    %v684 = vpop.f32.mrf.mxu0
    %v685 = vadd.f32 %v589, %v684
    %686 = vdwg.mxu0
    %687 = vmatpush.bf16.msra.mxu0 %v656
    %688 = vmatpush.bf16.msra.mxu0 %v654
    %689 = vmatpush.bf16.msra.mxu0 %v652
    %690 = vmatpush.bf16.msra.mxu0 %v650
    %691 = vmatpush.bf16.msra.mxu0 %v648
    %692 = vmatpush.bf16.msra.mxu0 %v646
    %693 = vmatpush.bf16.msra.mxu0 %v644
    %694 = vmatpush.bf16.msra.mxu0 %v642
    %695 = vmatmul.bf16.gmra.mxu0 %v570
    %v696 = vpop.f32.mrf.mxu0
    %v697 = vadd.f32 %v590, %v696
    %v698 = vpop.f32.mrf.mxu0
    %v699 = vadd.f32 %v590, %v698
    %700 = vdwg.mxu0
    %v701 = vpack.c.bf16 %v685, %v683
    %v702 = vpack.c.bf16 %v699, %v697
    %v703 = vld [vmem:[%s8] sm:$0xff]
    %v704 = vld [vmem:[%s8 + $0x8] sm:$0xff]
    %v705 = vld [vmem:[%s8 + $0x10] sm:$0xff]
    %v706 = vld [vmem:[%s8 + $0x18] sm:$0xff]
    %v707 = vld [vmem:[%s8 + $0x20] sm:$0xff]
    %v708 = vld [vmem:[%s8 + $0x28] sm:$0xff]
    %v709 = vld [vmem:[%s8 + $0x30] sm:$0xff]
    %v710 = vld [vmem:[%s8 + $0x38] sm:$0xff]
    %v711 = vld [vmem:[%s8 + $0x40] sm:$0xff]
    %v712 = vld [vmem:[%s8 + $0x48] sm:$0xff]
    %v713 = vld [vmem:[%s8 + $0x50] sm:$0xff]
    %v714 = vld [vmem:[%s8 + $0x58] sm:$0xff]
    %v715 = vld [vmem:[%s8 + $0x60] sm:$0xff]
    %v716 = vld [vmem:[%s8 + $0x68] sm:$0xff]
    %v717 = vld [vmem:[%s8 + $0x70] sm:$0xff]
    %v718 = vld [vmem:[%s8 + $0x78] sm:$0xff]
    %v719 = vld [vmem:[%s8 + $0x80] sm:$0xff]
    %v720 = vld [vmem:[%s8 + $0x88] sm:$0xff]
    %v721 = vld [vmem:[%s8 + $0x90] sm:$0xff]
    %v722 = vld [vmem:[%s8 + $0x98] sm:$0xff]
    %v723 = vld [vmem:[%s8 + $0xa0] sm:$0xff]
    %v724 = vld [vmem:[%s8 + $0xa8] sm:$0xff]
    %v725 = vld [vmem:[%s8 + $0xb0] sm:$0xff]
    %v726 = vld [vmem:[%s8 + $0xb8] sm:$0xff]
    %v727 = vld [vmem:[%s8 + $0xc0] sm:$0xff]
    %v728 = vld [vmem:[%s8 + $0xc8] sm:$0xff]
    %v729 = vld [vmem:[%s8 + $0xd0] sm:$0xff]
    %v730 = vld [vmem:[%s8 + $0xd8] sm:$0xff]
    %v731 = vld [vmem:[%s8 + $0xe0] sm:$0xff]
    %v732 = vld [vmem:[%s8 + $0xe8] sm:$0xff]
    %v733 = vld [vmem:[%s8 + $0xf0] sm:$0xff]
    %v734 = vld [vmem:[%s8 + $0xf8] sm:$0xff]
    %v735 = vld [vmem:[%s9] sm:$0x3]
    %v737 = vperm.slane %v735, 0
    %v738 = vperm.slane %v735, 1
    %v773 = vunpack.c.l.b16 %v703
    %v774 = vunpack.c.h.b16 %v703
    %v775 = vunpack.c.l.b16 %v704
    %v776 = vunpack.c.h.b16 %v704
    %v777 = vunpack.c.l.b16 %v705
    %v778 = vunpack.c.h.b16 %v705
    %v779 = vunpack.c.l.b16 %v706
    %v780 = vunpack.c.h.b16 %v706
    %v781 = vunpack.c.l.b16 %v707
    %v782 = vunpack.c.h.b16 %v707
    %v783 = vunpack.c.l.b16 %v708
    %v784 = vunpack.c.h.b16 %v708
    %v785 = vunpack.c.l.b16 %v709
    %v786 = vunpack.c.h.b16 %v709
    %v787 = vunpack.c.l.b16 %v710
    %v788 = vunpack.c.h.b16 %v710
    %v789 = vunpack.c.l.b16 %v711
    %v790 = vunpack.c.h.b16 %v711
    %v791 = vunpack.c.l.b16 %v712
    %v792 = vunpack.c.h.b16 %v712
    %v793 = vunpack.c.l.b16 %v713
    %v794 = vunpack.c.h.b16 %v713
    %v795 = vunpack.c.l.b16 %v714
    %v796 = vunpack.c.h.b16 %v714
    %v797 = vunpack.c.l.b16 %v715
    %v798 = vunpack.c.h.b16 %v715
    %v799 = vunpack.c.l.b16 %v716
    %v800 = vunpack.c.h.b16 %v716
    %v801 = vunpack.c.l.b16 %v717
    %v802 = vunpack.c.h.b16 %v717
    %v803 = vunpack.c.l.b16 %v718
    %v804 = vunpack.c.h.b16 %v718
    %v805 = vunpack.c.l.b16 %v719
    %v806 = vunpack.c.h.b16 %v719
    %v807 = vunpack.c.l.b16 %v720
    %v808 = vunpack.c.h.b16 %v720
    %v809 = vunpack.c.l.b16 %v721
    %v810 = vunpack.c.h.b16 %v721
    %v811 = vunpack.c.l.b16 %v722
    %v812 = vunpack.c.h.b16 %v722
    %v813 = vunpack.c.l.b16 %v723
    %v814 = vunpack.c.h.b16 %v723
    %v815 = vunpack.c.l.b16 %v724
    %v816 = vunpack.c.h.b16 %v724
    %v817 = vunpack.c.l.b16 %v725
    %v818 = vunpack.c.h.b16 %v725
    %v819 = vunpack.c.l.b16 %v726
    %v820 = vunpack.c.h.b16 %v726
    %v821 = vunpack.c.l.b16 %v727
    %v822 = vunpack.c.h.b16 %v727
    %v823 = vunpack.c.l.b16 %v728
    %v824 = vunpack.c.h.b16 %v728
    %v825 = vunpack.c.l.b16 %v729
    %v826 = vunpack.c.h.b16 %v729
    %v827 = vunpack.c.l.b16 %v730
    %v828 = vunpack.c.h.b16 %v730
    %v829 = vunpack.c.l.b16 %v731
    %v830 = vunpack.c.h.b16 %v731
    %v831 = vunpack.c.l.b16 %v732
    %v832 = vunpack.c.h.b16 %v732
    %v833 = vunpack.c.l.b16 %v733
    %v834 = vunpack.c.h.b16 %v733
    %v835 = vunpack.c.l.b16 %v734
    %v836 = vunpack.c.h.b16 %v734
    %v837 = vpack.c.b16 %v775, %v773
    %v838 = vpack.c.b16 %v776, %v774
    %v839 = vpack.c.b16 %v779, %v777
    %v840 = vpack.c.b16 %v780, %v778
    %v841 = vpack.c.b16 %v783, %v781
    %v842 = vpack.c.b16 %v784, %v782
    %v843 = vpack.c.b16 %v787, %v785
    %v844 = vpack.c.b16 %v788, %v786
    %v845 = vpack.c.b16 %v791, %v789
    %v846 = vpack.c.b16 %v792, %v790
    %v847 = vpack.c.b16 %v795, %v793
    %v848 = vpack.c.b16 %v796, %v794
    %v849 = vpack.c.b16 %v799, %v797
    %v850 = vpack.c.b16 %v800, %v798
    %v851 = vpack.c.b16 %v803, %v801
    %v852 = vpack.c.b16 %v804, %v802
    %v853 = vpack.c.b16 %v807, %v805
    %v854 = vpack.c.b16 %v808, %v806
    %v855 = vpack.c.b16 %v811, %v809
    %v856 = vpack.c.b16 %v812, %v810
    %v857 = vpack.c.b16 %v815, %v813
    %v858 = vpack.c.b16 %v816, %v814
    %v859 = vpack.c.b16 %v819, %v817
    %v860 = vpack.c.b16 %v820, %v818
    %v861 = vpack.c.b16 %v823, %v821
    %v862 = vpack.c.b16 %v824, %v822
    %v863 = vpack.c.b16 %v827, %v825
    %v864 = vpack.c.b16 %v828, %v826
    %v865 = vpack.c.b16 %v831, %v829
    %v866 = vpack.c.b16 %v832, %v830
    %v867 = vpack.c.b16 %v835, %v833
    %v868 = vpack.c.b16 %v836, %v834
    %901 = vmatpush.bf16.msra.mxu0 %v851
    %902 = vmatpush.bf16.msra.mxu0 %v849
    %903 = vmatpush.bf16.msra.mxu0 %v847
    %904 = vmatpush.bf16.msra.mxu0 %v845
    %905 = vmatpush.bf16.msra.mxu0 %v843
    %906 = vmatpush.bf16.msra.mxu0 %v841
    %907 = vmatpush.bf16.msra.mxu0 %v839
    %908 = vmatpush.bf16.msra.mxu0 %v837
    %909 = vmatmul.bf16.gmra.mxu0 %v701
    %v910 = vpop.f32.mrf.mxu0
    %v911 = vadd.f32 %v737, %v910
    %v912 = vpop.f32.mrf.mxu0
    %v913 = vadd.f32 %v737, %v912
    %914 = vdwg.mxu0
    %915 = vmatpush.bf16.msra.mxu0 %v867
    %916 = vmatpush.bf16.msra.mxu0 %v865
    %917 = vmatpush.bf16.msra.mxu0 %v863
    %918 = vmatpush.bf16.msra.mxu0 %v861
    %919 = vmatpush.bf16.msra.mxu0 %v859
    %920 = vmatpush.bf16.msra.mxu0 %v857
    %921 = vmatpush.bf16.msra.mxu0 %v855
    %922 = vmatpush.bf16.msra.mxu0 %v853
    %923 = vmatmul.bf16.gmra.mxu0 %v702
    %v924 = vpop.f32.mrf.mxu0
    %v925 = vadd.f32 %v911, %v924
    %v926 = vpop.f32.mrf.mxu0
    %v927 = vadd.f32 %v913, %v926
    %928 = vdwg.mxu0
    %929 = vmatpush.bf16.msra.mxu0 %v852
    %930 = vmatpush.bf16.msra.mxu0 %v850
    %931 = vmatpush.bf16.msra.mxu0 %v848
    %932 = vmatpush.bf16.msra.mxu0 %v846
    %933 = vmatpush.bf16.msra.mxu0 %v844
    %934 = vmatpush.bf16.msra.mxu0 %v842
    %935 = vmatpush.bf16.msra.mxu0 %v840
    %936 = vmatpush.bf16.msra.mxu0 %v838
    %937 = vmatmul.bf16.gmra.mxu0 %v701
    %v938 = vpop.f32.mrf.mxu0
    %v939 = vadd.f32 %v738, %v938
    %v940 = vpop.f32.mrf.mxu0
    %v941 = vadd.f32 %v738, %v940
    %942 = vdwg.mxu0
    %943 = vmatpush.bf16.msra.mxu0 %v868
    %944 = vmatpush.bf16.msra.mxu0 %v866
    %945 = vmatpush.bf16.msra.mxu0 %v864
    %946 = vmatpush.bf16.msra.mxu0 %v862
    %947 = vmatpush.bf16.msra.mxu0 %v860
    %948 = vmatpush.bf16.msra.mxu0 %v858
    %949 = vmatpush.bf16.msra.mxu0 %v856
    %950 = vmatpush.bf16.msra.mxu0 %v854
    %951 = vmatmul.bf16.gmra.mxu0 %v702
    %v952 = vpop.f32.mrf.mxu0
    %v953 = vadd.f32 %v939, %v952
    %v954 = vpop.f32.mrf.mxu0
    %v955 = vadd.f32 %v941, %v954
    %956 = vdwg.mxu0
    %v957 = vsub.f32 0.0, %v925
    %v958 = vsub.f32 0.0, %v953
    %v959 = vsub.f32 0.0, %v927
    %v960 = vsub.f32 0.0, %v955
    %v961 = vmul.f32 %v957, 1.442695
    %v962 = vpow.pop %v961
    %v963 = vmul.f32 %v958, 1.442695
    %v964 = vpow.pop %v963
    %v965 = vmul.f32 %v959, 1.442695
    %v966 = vpow.pop %v965
    %v967 = vmul.f32 %v960, 1.442695
    %v968 = vpow.pop %v967
    %v969 = vadd.f32 %v962, 1.0
    %v970 = vadd.f32 %v964, 1.0
    %v971 = vadd.f32 %v966, 1.0
    %v972 = vadd.f32 %v968, 1.0
    %v973 = vrcp.pop %v969
    %v974 = vrcp.pop %v970
    %v975 = vrcp.pop %v971
    %v976 = vrcp.pop %v972
    %977 = vst [vmem:[#allocation2] sm:$0xff] %v973
    %978 = vst [vmem:[#allocation2 + $0x8] sm:$0xff] %v974
    %979 = vst [vmem:[#allocation2 + $0x10] sm:$0xff] %v975
    %980 = vst [vmem:[#allocation2 + $0x18] sm:$0xff] %v976
    %981 = vst [vmem:[%s11] sm:$0xff] %v532
    %982 = vst [vmem:[%s11 + $0x8] sm:$0xff] %v560
    %983 = vst [vmem:[%s11 + $0x10] sm:$0xff] %v534
    %984 = vst [vmem:[%s11 + $0x18] sm:$0xff] %v562
    // Predicated region
    $region42: #{vae_forward.1} parent=1 // pred_check
      _
    $region43: #{vae_forward.1} parent=1 // pred_check_branch
      %986 = sbr.rel (0) target = $region45
    $region44: #{vae_forward.1} parent=1 // pred_region
      %988 = vsyncadd [#allocation3], 0
      %s989 = sshll.u32 [#allocation2], 4
      %s990 = int_to_ptr.vmem [resolvable:$true] %s989
      %s991 = sshll.u32 %s10, 4
      %s992 = int_to_ptr.hbm [resolvable:$true] %s991
      %997 = dma.vmem_to_hbm [thread:$0]  %s990, 512, %s992, [#allocation3], 256, 256, 16
    $region45: #{vae_forward.1} parent=1 // pred_fallthru
      _
    // Predicated region
    $region46: #{vae_forward.1} parent=1 // pred_check
      _
    $region47: #{vae_forward.1} parent=1 // pred_check_branch
      %999 = sbr.rel (0) target = $region49
    $region48: #{vae_forward.1} parent=1 // pred_region
      _
    $region49: #{vae_forward.1} parent=1 // pred_fallthru
      _
    // Predicated region
    $region50: #{vae_forward.1} parent=1 // pred_check
      _
    $region51: #{vae_forward.1} parent=1 // pred_check_branch
      %1001 = sbr.rel (0) target = $region53
    $region52: #{vae_forward.1} parent=1 // pred_region
      %1003 = dma.done [#allocation3], 512
    $region53: #{vae_forward.1} parent=1 // pred_fallthru
      _
    // Predicated region
    $region54: #{vae_forward.1} parent=1 // pred_check
      _
    $region55: #{vae_forward.1} parent=1 // pred_check_branch
      %1005 = sbr.rel (0) target = $region57
    $region56: #{vae_forward.1} parent=1 // pred_region
      _
    $region57: #{vae_forward.1} parent=1 // pred_fallthru
      _
    %1006 = vsyncpa [#allocation3], 1

</llo_original>
